<compile_context>
chip_gen: v6e
topology: v6e:2x2x1
jax: 0.10.0
libtpu: 0.0.40
codegen_flags: <defaults>
</compile_context>

<pallas_src>
import jax
import jax.numpy as jnp
from jax import lax
from jax.experimental import pallas as pl
from jax.experimental.pallas import tpu as pltpu

RATES = (1, 6, 12, 18)


def _aspp_kernel(slab_ref, g_ref, bias_ref, o_ref):
    """One batch element per grid step.

    slab_ref: (1, H, K_pad)    bf16 shifted input slab (band t = rows shifted by dh_t)
    g_ref:    (K_pad, W*Cout)  bf16 stacked banded folded weights
    bias_ref: (1, W*Cout)      f32 folded bias constant (tiled over W)
    o_ref:    (1, H, W*Cout)   f32 output (single lane-dense full-tile store)
    """
    acc = jnp.dot(slab_ref[0], g_ref[...], preferred_element_type=jnp.float32)
    o_ref[0] = acc + bias_ref[...]


def _fold_params(params, H, W):
    """Fold eval-BN + conv biases + the 1x1 conv into stacked banded weights.

    Returns:
      G:    (K_pad, W*Cout) bf16 — per-dh banded matrices stacked along K,
            zero-padded so K_pad is a multiple of 128 lanes.
      bias: (1, W*Cout) f32 — folded constant, tiled over W.
      dhs:  tuple of vertical tap shifts, in the band order used for G.
    """
    wb = params["wb"]                            # (4, 3, 3, Cin, Cout)
    Cin, Cout = wb.shape[3], wb.shape[4]
    w5, b5 = params["w5"], params["b5"]

    # (scale_b * W3x3_b) @ W1x1 — exact (no nonlinearity before c5).
    # Fold in f32; cast only the final stacked G to bf16 (per review).
    wf = wb * params["scale"][:, None, None, None, :]
    wf = jnp.einsum("bxyio,od->bxyid", wf, w5)   # (4, 3, 3, Cin, Cout)

    bconst = jnp.sum(params["scale"] * params["bias"] + params["shift"], axis=0)
    bconst = bconst @ w5 + b5                    # (Cout,)
    bias_tiled = jnp.tile(bconst, W)[None, :].astype(jnp.float32)  # (1, W*Cout)

    # Group taps by vertical shift dh; one banded (W*Cin, W*Cout) matrix per
    # group: row (w_src*Cin + ci) -> col (w_out*Cout + co).
    w_idx = jnp.arange(W)
    groups = {}
    for b, r in enumerate(RATES):
        for kh in range(3):
            dh = (kh - 1) * r
            if min(H, H - dh) <= max(0, -dh):
                continue                          # tap never lands in-image
            g = groups.get(dh, jnp.zeros((W * Cin, W * Cout), jnp.float32))
            for kw in range(3):
                dw = (kw - 1) * r
                src = w_idx + dw                  # source column per out col
                sel = ((w_idx[:, None] == src[None, :]) &
                       (src >= 0)[None, :] & (src < W)[None, :])
                sel = sel.astype(jnp.float32)     # (W_src, W_out)
                g = g + jnp.einsum("pw,ic->piwc", sel,
                                   wf[b, kh, kw]).reshape(W * Cin, W * Cout)
            groups[dh] = g

    dhs = tuple(sorted(groups))
    G = jnp.concatenate([groups[d] for d in dhs], axis=0)   # (T*W*Cin, W*Cout)
    K = G.shape[0]
    K_pad = ((K + 127) // 128) * 128
    G = jnp.pad(G, ((0, K_pad - K), (0, 0))).astype(jnp.bfloat16)
    return G, bias_tiled, dhs


def _build_slab(x_flat, dhs, K_pad):
    """Shifted, zero-padded input slab (N, H, K_pad) in bf16.

    Band t at output row h = x[h + dh_t, :] (zeros when h + dh_t is outside
    the image — identical to the convolutions' zero padding).
    """
    N, H, WCi = x_flat.shape
    hpad = max(abs(d) for d in dhs)
    xp = jnp.pad(x_flat, ((0, 0), (hpad, hpad), (0, 0)))
    bands = [xp[:, hpad + d:hpad + d + H, :] for d in dhs]
    slab = jnp.concatenate(bands, axis=-1)                   # (N, H, T*WCi)
    slab = jnp.pad(slab, ((0, 0), (0, 0), (0, K_pad - slab.shape[-1])))
    return slab.astype(jnp.bfloat16)


def aspp_pallas(x_nhwc, params):
    """x_nhwc: (N, H, W, Cin) float32 -> (N, H, W, Cout) float32."""
    N, H, W, Cin = x_nhwc.shape
    Cout = params["w5"].shape[-1]

    G, bias_tiled, dhs = _fold_params(params, H, W)
    K_pad = G.shape[0]
    WCo = W * Cout

    x_flat = x_nhwc.reshape(N, H, W * Cin)        # free row-major reshape
    slab = _build_slab(x_flat, dhs, K_pad)        # (N, H, K_pad) bf16

    out_flat = pl.pallas_call(
        _aspp_kernel,
        out_shape=jax.ShapeDtypeStruct((N, H, WCo), jnp.float32),
        grid_spec=pltpu.PrefetchScalarGridSpec(
            num_scalar_prefetch=0,
            grid=(N,),
            in_specs=[
                pl.BlockSpec((1, H, K_pad), lambda n: (n, 0, 0)),
                # NOTE: G/bias index_maps are grid-invariant; a single
                # pipeline buffer (pl.Buffered(1)) or a one-shot manual DMA
                # would halve their VMEM residency — negligible here (G is
                # 128 KiB in bf16), so they stay default double-buffered.
                pl.BlockSpec((K_pad, WCo), lambda n: (0, 0)),
                pl.BlockSpec((1, WCo), lambda n: (0, 0)),
            ],
            out_specs=pl.BlockSpec((1, H, WCo), lambda n: (n, 0, 0)),
        ),
        compiler_params=pltpu.CompilerParams(
            dimension_semantics=("parallel",)),
    )(slab, G, bias_tiled)
    return out_flat.reshape(N, H, W, Cout)


def init_params(key, in_c, out_c):
    """Deterministic synthetic parameters (mirrors the PyTorch module shapes)."""
    ks = jax.random.split(key, 26)
    eps = 1e-5
    wb, bias, scale, shift = [], [], [], []
    for b in range(4):
        k = ks[6 * b:6 * b + 6]
        w = jax.random.normal(k[0], (3, 3, in_c, out_c), jnp.float32) * 0.1
        cb = jax.random.normal(k[1], (out_c,), jnp.float32) * 0.1
        gamma = 1.0 + 0.1 * jax.random.normal(k[2], (out_c,), jnp.float32)
        beta = 0.1 * jax.random.normal(k[3], (out_c,), jnp.float32)
        rmean = 0.05 * jax.random.normal(k[4], (out_c,), jnp.float32)
        rvar = 1.0 + 0.1 * jnp.abs(jax.random.normal(k[5], (out_c,), jnp.float32))
        s = gamma / jnp.sqrt(rvar + eps)           # BN eval-mode scale
        sh = beta - s * rmean                      # BN eval-mode shift
        wb.append(w); bias.append(cb); scale.append(s); shift.append(sh)
    w5 = jax.random.normal(ks[24], (out_c, out_c), jnp.float32) * 0.1
    b5 = jax.random.normal(ks[25], (out_c,), jnp.float32) * 0.1
    return {
        "wb": jnp.stack(wb),         # (4, 3, 3, in_c, out_c)  HWIO per branch
        "bias": jnp.stack(bias),     # (4, out_c)              conv biases
        "scale": jnp.stack(scale),   # (4, out_c)              BN eval scale
        "shift": jnp.stack(shift),   # (4, out_c)              BN eval shift
        "w5": w5,                    # (out_c, out_c)          1x1 conv weight
        "b5": b5,                    # (out_c,)                1x1 conv bias
    }


def aspp_reference(x_nhwc, params):
    """Plain-JAX reference: 4 dilated 3x3 convs (+bias) + eval BN + sum + 1x1."""
    dn = lax.conv_dimension_numbers(x_nhwc.shape, (3, 3, 1, 1),
                                    ("NHWC", "HWIO", "NHWC"))
    acc = None
    for b, r in enumerate(RATES):
        y = lax.conv_general_dilated(
            x_nhwc, params["wb"][b], window_strides=(1, 1),
            padding=[(r, r), (r, r)], rhs_dilation=(r, r),
            dimension_numbers=dn)
        y = y + params["bias"][b][None, None, None, :]
        y = y * params["scale"][b] + params["shift"][b]
        acc = y if acc is None else acc + y
    return jnp.einsum("nhwc,cd->nhwd", acc, params["w5"]) + params["b5"]


if __name__ == "__main__":
    key = jax.random.PRNGKey(0)
    k_x, k_p = jax.random.split(key)

    N, Cin, H, W = 2, 4, 16, 16
    Cout = 8

    # PyTorch-style NCHW input, transposed to NHWC for the kernel.
    x_nchw = jax.random.normal(k_x, (N, Cin, H, W), jnp.float32)
    x_nhwc = jnp.transpose(x_nchw, (0, 2, 3, 1))

    params = init_params(k_p, Cin, Cout)

    out = aspp_pallas(x_nhwc, params)
    out = jax.block_until_ready(out)

    ref = aspp_reference(x_nhwc, params)
    assert out.shape == (N, H, W, Cout)
    err = jnp.max(jnp.abs(out - ref))
    # Tolerance loosened from 1e-3 (pure f32) to 2e-2 because weights and the
    # input slab are cast to bf16 for the MXU matmul (f32 accumulate).
    assert jnp.allclose(out, ref, atol=2e-2, rtol=2e-2), f"max err {err}"

    print("KERNEL_OK")
</pallas_src>

<mosaic_0001>
module attributes {stable_mosaic.version = 11 : i64} {
  func.func @_aspp_kernel(%arg0: i32, %arg1: memref<1x16x512xbf16, #tpu.memory_space<vmem>>, %arg2: memref<512x128xbf16, #tpu.memory_space<vmem>>, %arg3: memref<1x128xf32, #tpu.memory_space<vmem>>, %arg4: memref<1x16x128xf32, #tpu.memory_space<vmem>>) attributes {dimension_semantics = [#tpu.dimension_semantics<parallel>], iteration_bounds = array<i64: 2>, scalar_prefetch = 0 : i64, scratch_operands = 0 : i64, tpu.core_type = #tpu.core_type<tc>, window_params = [{transform_indices = @transform_0, window_bounds = array<i64: 1, 16, 512>}, {pipeline_mode = #tpu.pipeline_mode<synchronous>, transform_indices = @transform_1, window_bounds = array<i64: 512, 128>}, {pipeline_mode = #tpu.pipeline_mode<synchronous>, transform_indices = @transform_2, window_bounds = array<i64: 1, 128>}, {transform_indices = @transform_3, window_bounds = array<i64: 1, 16, 128>}]} {
    %c0 = arith.constant 0 : index
    %c0_0 = arith.constant 0 : index
    %c0_1 = arith.constant 0 : index
    %0 = vector.load %arg1[%c0, %c0_0, %c0_1] : memref<1x16x512xbf16, #tpu.memory_space<vmem>>, vector<1x16x512xbf16>
    %1 = vector.shape_cast %0 : vector<1x16x512xbf16> to vector<16x512xbf16>
    %c0_2 = arith.constant 0 : index
    %c0_3 = arith.constant 0 : index
    %2 = vector.load %arg2[%c0_2, %c0_3] : memref<512x128xbf16, #tpu.memory_space<vmem>>, vector<512x128xbf16>
    %cst = arith.constant dense<0.000000e+00> : vector<16x128xf32>
    %3 = tpu.matmul %1, %2, %cst {dimension_numbers = #tpu.dot_dimension_numbers<[1], [0], [0], [1], [0, 0, 1, 1], [], []>} : vector<16x512xbf16>, vector<512x128xbf16>, vector<16x128xf32> -> vector<16x128xf32>
    %c0_4 = arith.constant 0 : index
    %c0_5 = arith.constant 0 : index
    %4 = vector.load %arg3[%c0_4, %c0_5] : memref<1x128xf32, #tpu.memory_space<vmem>>, vector<1x128xf32>
    %5 = vector.broadcast %4 : vector<1x128xf32> to vector<16x128xf32>
    %6 = arith.addf %3, %5 : vector<16x128xf32>
    %c0_6 = arith.constant 0 : index
    %c0_7 = arith.constant 0 : index
    %c0_8 = arith.constant 0 : index
    %7 = vector.load %arg4[%c0_6, %c0_7, %c0_8] : memref<1x16x128xf32, #tpu.memory_space<vmem>>, vector<1x16x128xf32>
    %8 = vector.shape_cast %7 : vector<1x16x128xf32> to vector<16x128xf32>
    %9 = vector.shape_cast %6 : vector<16x128xf32> to vector<1x16x128xf32>
    tpu.vector_store %arg4[%c0_6, %c0_7, %c0_8], %9 {strides = array<i32>} : memref<1x16x128xf32, #tpu.memory_space<vmem>>, vector<1x16x128xf32>,
    return
  }
  func.func @transform_0(%arg0: i32) -> (i32, i32, i32) {
    %c0_i32 = arith.constant 0 : i32
    %c0_i32_0 = arith.constant 0 : i32
    %c0_i32_1 = arith.constant 0 : i32
    return %arg0, %c0_i32, %c0_i32_0 : i32, i32, i32
  }
  func.func @transform_1(%arg0: i32) -> (i32, i32) {
    %c0_i32 = arith.constant 0 : i32
    %c0_i32_0 = arith.constant 0 : i32
    %c0_i32_1 = arith.constant 0 : i32
    return %c0_i32, %c0_i32_0 : i32, i32
  }
  func.func @transform_2(%arg0: i32) -> (i32, i32) {
    %c0_i32 = arith.constant 0 : i32
    %c0_i32_0 = arith.constant 0 : i32
    %c0_i32_1 = arith.constant 0 : i32
    return %c0_i32, %c0_i32_0 : i32, i32
  }
  func.func @transform_3(%arg0: i32) -> (i32, i32, i32) {
    %c0_i32 = arith.constant 0 : i32
    %c0_i32_0 = arith.constant 0 : i32
    %c0_i32_1 = arith.constant 0 : i32
    return %arg0, %c0_i32, %c0_i32_0 : i32, i32, i32
  }
}

</mosaic_0001>

<llo_original>
// kernel: tpu_custom_call.1
$region0: #{tpu_custom_call.1}
  #allocation0 [shape = 'u32[]', space=smem, size = 0x4, offset = 0x4, fixed_abs, tag = 'smem constant byte address 0x4 - core index']
  #allocation1 [shape = 'u32[144,128]{1,0:T(1,128)}', space=vmem, size = 0x12000, scoped, tag = 'internal scratch']
  %s0 = inlined_call_operand.hbm [shape: bf16[2,16,512], index: 0, kind: input, shape index: {}]
  %s1 = inlined_call_operand.hbm [shape: bf16[512,128], index: 1, kind: input, shape index: {}]
  %s2 = inlined_call_operand.vmem [shape: f32[1,128], index: 2, kind: input, shape index: {}]
  %s3 = inlined_call_operand.hbm [shape: f32[2,16,128], index: 3, kind: output, shape index: {}]
  %s4 = sld [smem:[#allocation0]]
  $region53: #{tpu_custom_call.1} parent=0
    _
  %s6 = ssub.s32 1, %s4
  %s7 = scalar_select 0, %s6, %s4
  $region1: #{tpu_custom_call.1} parent=0
    #allocation2 [shape = 'u8[32768]{0}', space=vmem, size = 0x8000, scoped, tag = 'input window, operand 0']
    #allocation3 [shape = 's32[2]{0}', space=sflag, size = 0x8, scoped, tag = 'scoped memory for tpu_custom_call.1']
    #allocation4 [shape = 's32[2]{0}', space=sflag, size = 0x8, scoped, tag = 'scoped memory for tpu_custom_call.1']
    #allocation5 [shape = 'u8[131072]{0}', space=vmem, size = 0x20000, scoped, tag = 'input window, operand 1, single buffered']
    #allocation6 [shape = 's32[1]{0}', space=sflag, size = 0x4, scoped, tag = 'scoped memory for tpu_custom_call.1']
    #allocation7 [shape = 'u8[16384]{0}', space=vmem, size = 0x4000, scoped, tag = 'output window, operand 0']
    %8 = vsyncpa [#allocation3], 0
    %s9 = scalar_lea.sflag [#allocation3], 1
    %10 = vsyncpa %s9, 0
    %11 = vsyncpa [#allocation6], 0
    %12 = vsyncpa [#allocation4], 0
    %s13 = scalar_lea.sflag [#allocation4], 1
    %14 = vsyncpa %s13, 0
    loop: start=0, step=1, limit=4
    $region2: #{tpu_custom_call.1} parent=1 // loop_pre_header
      _
    $region3: #{tpu_custom_call.1} parent=1 // loop_header
      %s16 = sphi 0, %s20
      %p17 = scmp.ge.s32.totalorder %s16, 4
      %s26 = sphi 0, %s28
      %s29 = sphi 0, %s26
      %s30 = sphi 0, %s29
      %s46 = sphi 0, %s30
      %s50 = sphi 0, %s50
      %s52 = sphi 0, %s50
      %s53 = sphi 0, %s52
      %s67 = sphi 0, %s53
      %s71 = sphi 0, %s71
      %s73 = sphi 0, %s71
      %s74 = sphi 0, %s73
      %s88 = sphi 0, %s74
      %s94 = sphi 0, %s96
      %s97 = sphi 0, %s94
      %s98 = sphi 0, %s97
      %s114 = sphi 0, %s98
    $region4: #{tpu_custom_call.1} parent=1 // loop_header_branch
      %19 = sbr.rel (%p17) target = $region8
    $region5: #{tpu_custom_call.1} parent=1 // loop_body
      %s21 = ssub.s32 %s16, 1
      %s22 = ssub.s32 %s16, 2
      %s23 = sadd.s32 %s16, 1
      %s24 = ssub.s32 %s16, %s23
      %p25 = scmp.eq.s32.totalorder %s24, 0
      %s27 = sadd.s32 %s26, 1
      %s28 = scalar_select %p25, %s26, %s27
      %p31 = pneg %p25
      %p32 = scmp.eq.s32.totalorder %s16, 1
      %p33 = por %p31, %p32
      %p34 = scmp.ne.s32.totalorder %s26, %s29
      %p35 = scmp.eq.s32.totalorder %s16, 0
      %p36 = por %p34, %p35
      %p37 = scmp.ne.s32.totalorder %s26, %s29
      %p38 = scmp.eq.s32.totalorder %s21, 1
      %p39 = por %p37, %p38
      %p40 = scmp.ne.s32.totalorder %s29, %s30
      %p41 = scmp.eq.s32.totalorder %s21, 0
      %p42 = por %p40, %p41
      %p43 = scmp.ne.s32.totalorder %s29, %s30
      %p44 = scmp.eq.s32.totalorder %s22, 1
      %p45 = por %p43, %p44
      %p47 = scmp.ne.s32.totalorder %s30, %s46
      %p48 = scmp.eq.s32.totalorder %s22, 0
      %p49 = por %p47, %p48
      %s51 = sadd.s32 %s50, 1
      %p54 = scmp.eq.s32.totalorder %s16, 1
      %p55 = scmp.ne.s32.totalorder %s50, %s52
      %p56 = scmp.eq.s32.totalorder %s16, 0
      %p57 = por %p55, %p56
      %p58 = scmp.ne.s32.totalorder %s50, %s52
      %p59 = scmp.eq.s32.totalorder %s21, 1
      %p60 = por %p58, %p59
      %p61 = scmp.ne.s32.totalorder %s52, %s53
      %p62 = scmp.eq.s32.totalorder %s21, 0
      %p63 = por %p61, %p62
      %p64 = scmp.ne.s32.totalorder %s52, %s53
      %p65 = scmp.eq.s32.totalorder %s22, 1
      %p66 = por %p64, %p65
      %p68 = scmp.ne.s32.totalorder %s53, %s67
      %p69 = scmp.eq.s32.totalorder %s22, 0
      %p70 = por %p68, %p69
      %s72 = sadd.s32 %s71, 1
      %p75 = scmp.eq.s32.totalorder %s16, 1
      %p76 = scmp.ne.s32.totalorder %s71, %s73
      %p77 = scmp.eq.s32.totalorder %s16, 0
      %p78 = por %p76, %p77
      %p79 = scmp.ne.s32.totalorder %s71, %s73
      %p80 = scmp.eq.s32.totalorder %s21, 1
      %p81 = por %p79, %p80
      %p82 = scmp.ne.s32.totalorder %s73, %s74
      %p83 = scmp.eq.s32.totalorder %s21, 0
      %p84 = por %p82, %p83
      %p85 = scmp.ne.s32.totalorder %s73, %s74
      %p86 = scmp.eq.s32.totalorder %s22, 1
      %p87 = por %p85, %p86
      %p89 = scmp.ne.s32.totalorder %s74, %s88
      %p90 = scmp.eq.s32.totalorder %s22, 0
      %p91 = por %p89, %p90
      %s92 = ssub.s32 %s16, %s23
      %p93 = scmp.eq.s32.totalorder %s92, 0
      %s95 = sadd.s32 %s94, 1
      %s96 = scalar_select %p93, %s94, %s95
      %p99 = pneg %p93
      %p100 = scmp.eq.s32.totalorder %s16, 1
      %p101 = por %p99, %p100
      %p102 = scmp.ne.s32.totalorder %s94, %s97
      %p103 = scmp.eq.s32.totalorder %s16, 0
      %p104 = por %p102, %p103
      %p105 = scmp.ne.s32.totalorder %s94, %s97
      %p106 = scmp.eq.s32.totalorder %s21, 1
      %p107 = por %p105, %p106
      %p108 = scmp.ne.s32.totalorder %s97, %s98
      %p109 = scmp.eq.s32.totalorder %s21, 0
      %p110 = por %p108, %p109
      %p111 = scmp.ne.s32.totalorder %s97, %s98
      %p112 = scmp.eq.s32.totalorder %s22, 1
      %p113 = por %p111, %p112
      %p115 = scmp.ne.s32.totalorder %s98, %s114
      %p116 = scmp.eq.s32.totalorder %s22, 0
      %p117 = por %p115, %p116
      %p118 = scmp.le.s32.totalorder 1, %s16
      %p119 = scmp.lt.s32.totalorder %s16, 3
      %p120 = pnand %p118, %p119
      %p121 = pneg %p120
      // Predicated region
      $region9: #{tpu_custom_call.1} parent=5 // pred_check
        _
      $region10: #{tpu_custom_call.1} parent=5 // pred_check_branch
        %123 = sbr.rel (%p120) target = $region12
      $region11: #{tpu_custom_call.1} parent=5 // pred_region
        %s124 = ssub.s32 %s16, 1
        // Predicated region
        $region13: #{tpu_custom_call.1} parent=11 // pred_check
          %p125 = pneg %p63
        $region14: #{tpu_custom_call.1} parent=11 // pred_check_branch
          %127 = sbr.rel (%p125) target = $region16
        $region15: #{tpu_custom_call.1} parent=11 // pred_region
          %s129 = ssub.s32 4096, 4096
          %130 = vsyncadd [#allocation6], %s129
          %s131 = sshll.u32 [#allocation5], 4
          %s132 = int_to_ptr.vmem [resolvable:$true] %s131
          %137 = dma.hbm_to_vmem [thread:$0]  %s1, 4096, %s132, [#allocation6], 64, 64, 4
        $region16: #{tpu_custom_call.1} parent=11 // pred_fallthru
          _
        // Predicated region
        $region17: #{tpu_custom_call.1} parent=11 // pred_check
          %p138 = pneg %p84
        $region18: #{tpu_custom_call.1} parent=11 // pred_check_branch
          %140 = sbr.rel (%p138) target = $region20
        $region19: #{tpu_custom_call.1} parent=11 // pred_region
          _
        $region20: #{tpu_custom_call.1} parent=11 // pred_fallthru
          _
      $region12: #{tpu_custom_call.1} parent=5 // pred_fallthru
        _
      %p141 = scmp.lt.s32.totalorder %s16, 2
      // Predicated region
      $region21: #{tpu_custom_call.1} parent=5 // pred_check
        %p142 = pneg %p141
      $region22: #{tpu_custom_call.1} parent=5 // pred_check_branch
        %144 = sbr.rel (%p142) target = $region24
      $region23: #{tpu_custom_call.1} parent=5 // pred_region
        // Predicated region
        $region25: #{tpu_custom_call.1} parent=23 // pred_check
          %p145 = pneg %p36
        $region26: #{tpu_custom_call.1} parent=23 // pred_check_branch
          %147 = sbr.rel (%p145) target = $region28
        $region27: #{tpu_custom_call.1} parent=23 // pred_region
          %s148 = sand.u32 %s26, 1
          %s149 = scalar_lea.sflag [#allocation3], %s148
          %s150 = sand.u32 %s26, 1
          %s151 = smul.addr %s150, 32
          %s152 = scalar_lea.vmem [#allocation2], %s151
          %s154 = ssub.s32 512, 512
          %155 = vsyncadd %s149, %s154
          %s156 = smul.addr %s16, 8
          %s157 = smul.addr %s156, 64
          %s158 = scalar_lea.hbm %s0, %s157
          %s159 = sshll.u32 %s152, 4
          %s160 = int_to_ptr.vmem [resolvable:$true] %s159
          %165 = dma.hbm_to_vmem [thread:$0]  %s158, 512, %s160, %s149, 256, 256, 16
        $region28: #{tpu_custom_call.1} parent=23 // pred_fallthru
          _
      $region24: #{tpu_custom_call.1} parent=5 // pred_fallthru
        _
      %p166 = scmp.le.s32.totalorder 1, %s16
      %p167 = scmp.lt.s32.totalorder %s16, 3
      %p168 = pnand %p166, %p167
      %p169 = pneg %p168
      // Predicated region
      $region29: #{tpu_custom_call.1} parent=5 // pred_check
        _
      $region30: #{tpu_custom_call.1} parent=5 // pred_check_branch
        %171 = sbr.rel (%p168) target = $region32
      $region31: #{tpu_custom_call.1} parent=5 // pred_region
        %s172 = ssub.s32 %s16, 1
        %s173 = sand.u32 %s29, 1
        %s174 = scalar_lea.sflag [#allocation3], %s173
        %s175 = sand.u32 %s29, 1
        %s176 = smul.addr %s175, 32
        %s177 = scalar_lea.vmem [#allocation2], %s176
        // Predicated region
        $region33: #{tpu_custom_call.1} parent=31 // pred_check
          %p178 = pneg %p42
        $region34: #{tpu_custom_call.1} parent=31 // pred_check_branch
          %180 = sbr.rel (%p178) target = $region36
        $region35: #{tpu_custom_call.1} parent=31 // pred_region
          %181 = dma.done %s174, 512
        $region36: #{tpu_custom_call.1} parent=31 // pred_fallthru
          _
        // Predicated region
        $region37: #{tpu_custom_call.1} parent=31 // pred_check
          %p182 = pneg %p63
        $region38: #{tpu_custom_call.1} parent=31 // pred_check_branch
          %184 = sbr.rel (%p182) target = $region40
        $region39: #{tpu_custom_call.1} parent=31 // pred_region
          %185 = dma.done [#allocation6], 4096
        $region40: #{tpu_custom_call.1} parent=31 // pred_fallthru
          _
        %s186 = sand.u32 %s29, 1
        %s187 = scalar_lea.sflag [#allocation3], %s186
        %s188 = sand.u32 %s29, 1
        %s189 = smul.addr %s188, 32
        %s190 = scalar_lea.vmem [#allocation2], %s189
        %p191 = pneg %p42
        %p192 = pneg %p39
        %p193 = pneg %p63
        %p194 = pneg %p60
        %p195 = pneg %p84
        %p196 = pneg %p81
        %p197 = pneg %p110
        %p198 = pneg %p107
        %s199 = sand.u32 %s97, 1
        %s200 = scalar_lea.sflag [#allocation4], %s199
        %s201 = sand.u32 %s97, 1
        %s202 = smul.addr %s201, 16
        %s203 = scalar_lea.vmem [#allocation7], %s202
        %v205 = vld [vmem:[%s177] sm:$0xff]
        %v206 = vld [vmem:[%s177 + $0x8] sm:$0xff]
        %v207 = vld [vmem:[%s177 + $0x10] sm:$0xff]
        %v208 = vld [vmem:[%s177 + $0x18] sm:$0xff]
        %v209 = vld [vmem:[#allocation5] sm:$0xf]
        %v210 = vld [vmem:[#allocation5 + $0x4] sm:$0xf]
        %v211 = vld [vmem:[#allocation5 + $0x8] sm:$0xf]
        %v212 = vld [vmem:[#allocation5 + $0xc] sm:$0xf]
        %v213 = vld [vmem:[#allocation5 + $0x10] sm:$0xf]
        %v214 = vld [vmem:[#allocation5 + $0x14] sm:$0xf]
        %v215 = vld [vmem:[#allocation5 + $0x18] sm:$0xf]
        %v216 = vld [vmem:[#allocation5 + $0x1c] sm:$0xf]
        %v217 = vld [vmem:[#allocation5 + $0x20] sm:$0xf]
        %v218 = vld [vmem:[#allocation5 + $0x24] sm:$0xf]
        %v219 = vld [vmem:[#allocation5 + $0x28] sm:$0xf]
        %v220 = vld [vmem:[#allocation5 + $0x2c] sm:$0xf]
        %v221 = vld [vmem:[#allocation5 + $0x30] sm:$0xf]
        %v222 = vld [vmem:[#allocation5 + $0x34] sm:$0xf]
        %v223 = vld [vmem:[#allocation5 + $0x38] sm:$0xf]
        %v224 = vld [vmem:[#allocation5 + $0x3c] sm:$0xf]
        %v225 = vld [vmem:[#allocation5 + $0x40] sm:$0xf]
        %v226 = vld [vmem:[#allocation5 + $0x44] sm:$0xf]
        %v227 = vld [vmem:[#allocation5 + $0x48] sm:$0xf]
        %v228 = vld [vmem:[#allocation5 + $0x4c] sm:$0xf]
        %v229 = vld [vmem:[#allocation5 + $0x50] sm:$0xf]
        %v230 = vld [vmem:[#allocation5 + $0x54] sm:$0xf]
        %v231 = vld [vmem:[#allocation5 + $0x58] sm:$0xf]
        %v232 = vld [vmem:[#allocation5 + $0x5c] sm:$0xf]
        %v233 = vld [vmem:[#allocation5 + $0x60] sm:$0xf]
        %v234 = vld [vmem:[#allocation5 + $0x64] sm:$0xf]
        %v235 = vld [vmem:[#allocation5 + $0x68] sm:$0xf]
        %v236 = vld [vmem:[#allocation5 + $0x6c] sm:$0xf]
        %v237 = vld [vmem:[#allocation5 + $0x70] sm:$0xf]
        %v238 = vld [vmem:[#allocation5 + $0x74] sm:$0xf]
        %v239 = vld [vmem:[#allocation5 + $0x78] sm:$0xf]
        %v240 = vld [vmem:[#allocation5 + $0x7c] sm:$0xf]
        %v241 = vld [vmem:[#allocation5 + $0x80] sm:$0xf]
        %v242 = vld [vmem:[#allocation5 + $0x84] sm:$0xf]
        %v243 = vld [vmem:[#allocation5 + $0x88] sm:$0xf]
        %v244 = vld [vmem:[#allocation5 + $0x8c] sm:$0xf]
        %v245 = vld [vmem:[#allocation5 + $0x90] sm:$0xf]
        %v246 = vld [vmem:[#allocation5 + $0x94] sm:$0xf]
        %v247 = vld [vmem:[#allocation5 + $0x98] sm:$0xf]
        %v248 = vld [vmem:[#allocation5 + $0x9c] sm:$0xf]
        %v249 = vld [vmem:[#allocation5 + $0xa0] sm:$0xf]
        %v250 = vld [vmem:[#allocation5 + $0xa4] sm:$0xf]
        %v251 = vld [vmem:[#allocation5 + $0xa8] sm:$0xf]
        %v252 = vld [vmem:[#allocation5 + $0xac] sm:$0xf]
        %v253 = vld [vmem:[#allocation5 + $0xb0] sm:$0xf]
        %v254 = vld [vmem:[#allocation5 + $0xb4] sm:$0xf]
        %v255 = vld [vmem:[#allocation5 + $0xb8] sm:$0xf]
        %v256 = vld [vmem:[#allocation5 + $0xbc] sm:$0xf]
        %v257 = vld [vmem:[#allocation5 + $0xc0] sm:$0xf]
        %v258 = vld [vmem:[#allocation5 + $0xc4] sm:$0xf]
        %v259 = vld [vmem:[#allocation5 + $0xc8] sm:$0xf]
        %v260 = vld [vmem:[#allocation5 + $0xcc] sm:$0xf]
        %v261 = vld [vmem:[#allocation5 + $0xd0] sm:$0xf]
        %v262 = vld [vmem:[#allocation5 + $0xd4] sm:$0xf]
        %v263 = vld [vmem:[#allocation5 + $0xd8] sm:$0xf]
        %v264 = vld [vmem:[#allocation5 + $0xdc] sm:$0xf]
        %v265 = vld [vmem:[#allocation5 + $0xe0] sm:$0xf]
        %v266 = vld [vmem:[#allocation5 + $0xe4] sm:$0xf]
        %v267 = vld [vmem:[#allocation5 + $0xe8] sm:$0xf]
        %v268 = vld [vmem:[#allocation5 + $0xec] sm:$0xf]
        %v269 = vld [vmem:[#allocation5 + $0xf0] sm:$0xf]
        %v270 = vld [vmem:[#allocation5 + $0xf4] sm:$0xf]
        %v271 = vld [vmem:[#allocation5 + $0xf8] sm:$0xf]
        %v272 = vld [vmem:[#allocation5 + $0xfc] sm:$0xf]
        %v273 = vld [vmem:[%s2] sm:$0x1]
        %v275 = vlaneseq
        %v276 = vshrl.u32 %v275, 7
        %v277 = vsub.s32 0, %v276
        %v278 = vrot.slane %v273, %v277
        %v284 = vunpack.c.l.b16 %v205
        %v285 = vunpack.c.h.b16 %v205
        %v286 = vunpack.c.l.b16 %v206
        %v287 = vunpack.c.h.b16 %v206
        %v288 = vunpack.c.l.b16 %v207
        %v289 = vunpack.c.h.b16 %v207
        %v290 = vunpack.c.l.b16 %v208
        %v291 = vunpack.c.h.b16 %v208
        %v292 = vpack.c.b16 %v288, %v284
        %v293 = vpack.c.b16 %v289, %v285
        %v294 = vpack.c.b16 %v290, %v286
        %v295 = vpack.c.b16 %v291, %v287
        %v364 = vunpack.c.l.b16 %v209
        %v365 = vunpack.c.l.b16 %v210
        %v366 = vunpack.c.l.b16 %v211
        %v367 = vunpack.c.l.b16 %v212
        %v368 = vunpack.c.l.b16 %v213
        %v369 = vunpack.c.l.b16 %v214
        %v370 = vunpack.c.l.b16 %v215
        %v371 = vunpack.c.l.b16 %v216
        %v372 = vunpack.c.l.b16 %v217
        %v373 = vunpack.c.l.b16 %v218
        %v374 = vunpack.c.l.b16 %v219
        %v375 = vunpack.c.l.b16 %v220
        %v376 = vunpack.c.l.b16 %v221
        %v377 = vunpack.c.l.b16 %v222
        %v378 = vunpack.c.l.b16 %v223
        %v379 = vunpack.c.l.b16 %v224
        %v380 = vunpack.c.l.b16 %v225
        %v381 = vunpack.c.l.b16 %v226
        %v382 = vunpack.c.l.b16 %v227
        %v383 = vunpack.c.l.b16 %v228
        %v384 = vunpack.c.l.b16 %v229
        %v385 = vunpack.c.l.b16 %v230
        %v386 = vunpack.c.l.b16 %v231
        %v387 = vunpack.c.l.b16 %v232
        %v388 = vunpack.c.l.b16 %v233
        %v389 = vunpack.c.l.b16 %v234
        %v390 = vunpack.c.l.b16 %v235
        %v391 = vunpack.c.l.b16 %v236
        %v392 = vunpack.c.l.b16 %v237
        %v393 = vunpack.c.l.b16 %v238
        %v394 = vunpack.c.l.b16 %v239
        %v395 = vunpack.c.l.b16 %v240
        %v396 = vunpack.c.l.b16 %v241
        %v397 = vunpack.c.l.b16 %v242
        %v398 = vunpack.c.l.b16 %v243
        %v399 = vunpack.c.l.b16 %v244
        %v400 = vunpack.c.l.b16 %v245
        %v401 = vunpack.c.l.b16 %v246
        %v402 = vunpack.c.l.b16 %v247
        %v403 = vunpack.c.l.b16 %v248
        %v404 = vunpack.c.l.b16 %v249
        %v405 = vunpack.c.l.b16 %v250
        %v406 = vunpack.c.l.b16 %v251
        %v407 = vunpack.c.l.b16 %v252
        %v408 = vunpack.c.l.b16 %v253
        %v409 = vunpack.c.l.b16 %v254
        %v410 = vunpack.c.l.b16 %v255
        %v411 = vunpack.c.l.b16 %v256
        %v412 = vunpack.c.l.b16 %v257
        %v413 = vunpack.c.l.b16 %v258
        %v414 = vunpack.c.l.b16 %v259
        %v415 = vunpack.c.l.b16 %v260
        %v416 = vunpack.c.l.b16 %v261
        %v417 = vunpack.c.l.b16 %v262
        %v418 = vunpack.c.l.b16 %v263
        %v419 = vunpack.c.l.b16 %v264
        %v420 = vunpack.c.l.b16 %v265
        %v421 = vunpack.c.l.b16 %v266
        %v422 = vunpack.c.l.b16 %v267
        %v423 = vunpack.c.l.b16 %v268
        %v424 = vunpack.c.l.b16 %v269
        %v425 = vunpack.c.l.b16 %v270
        %v426 = vunpack.c.l.b16 %v271
        %v427 = vunpack.c.l.b16 %v272
        %v428 = vpack.c.b16 %v365, %v364
        %v429 = vpack.c.b16 %v367, %v366
        %v430 = vpack.c.b16 %v369, %v368
        %v431 = vpack.c.b16 %v371, %v370
        %v432 = vpack.c.b16 %v373, %v372
        %v433 = vpack.c.b16 %v375, %v374
        %v434 = vpack.c.b16 %v377, %v376
        %v435 = vpack.c.b16 %v379, %v378
        %v436 = vpack.c.b16 %v381, %v380
        %v437 = vpack.c.b16 %v383, %v382
        %v438 = vpack.c.b16 %v385, %v384
        %v439 = vpack.c.b16 %v387, %v386
        %v440 = vpack.c.b16 %v389, %v388
        %v441 = vpack.c.b16 %v391, %v390
        %v442 = vpack.c.b16 %v393, %v392
        %v443 = vpack.c.b16 %v395, %v394
        %v444 = vpack.c.b16 %v397, %v396
        %v445 = vpack.c.b16 %v399, %v398
        %v446 = vpack.c.b16 %v401, %v400
        %v447 = vpack.c.b16 %v403, %v402
        %v448 = vpack.c.b16 %v405, %v404
        %v449 = vpack.c.b16 %v407, %v406
        %v450 = vpack.c.b16 %v409, %v408
        %v451 = vpack.c.b16 %v411, %v410
        %v452 = vpack.c.b16 %v413, %v412
        %v453 = vpack.c.b16 %v415, %v414
        %v454 = vpack.c.b16 %v417, %v416
        %v455 = vpack.c.b16 %v419, %v418
        %v456 = vpack.c.b16 %v421, %v420
        %v457 = vpack.c.b16 %v423, %v422
        %v458 = vpack.c.b16 %v425, %v424
        %v459 = vpack.c.b16 %v427, %v426
        %492 = vmatprep.subr.bf16.mxu0 0
        %493 = vmatpush1.bf16.msra.mxu0 %v435
        %494 = vmatprep.subr.bf16.mxu0 0
        %495 = vmatpush1.bf16.msra.mxu0 %v434
        %496 = vmatprep.subr.bf16.mxu0 0
        %497 = vmatpush1.bf16.msra.mxu0 %v433
        %498 = vmatprep.subr.bf16.mxu0 0
        %499 = vmatpush1.bf16.msra.mxu0 %v432
        %500 = vmatprep.subr.bf16.mxu0 0
        %501 = vmatpush1.bf16.msra.mxu0 %v431
        %502 = vmatprep.subr.bf16.mxu0 0
        %503 = vmatpush1.bf16.msra.mxu0 %v430
        %504 = vmatprep.subr.bf16.mxu0 0
        %505 = vmatpush1.bf16.msra.mxu0 %v429
        %506 = vmatprep.subr.bf16.mxu0 0
        %507 = vmatpush1.bf16.msra.mxu0 %v428
        %508 = vmatprep.subr.bf16.mxu0 0
        %509 = vmatpush2.bf16.msra.mxu0 %v443
        %510 = vmatprep.subr.bf16.mxu0 0
        %511 = vmatpush2.bf16.msra.mxu0 %v442
        %512 = vmatprep.subr.bf16.mxu0 0
        %513 = vmatpush2.bf16.msra.mxu0 %v441
        %514 = vmatprep.subr.bf16.mxu0 0
        %515 = vmatpush2.bf16.msra.mxu0 %v440
        %516 = vmatprep.subr.bf16.mxu0 0
        %517 = vmatpush2.bf16.msra.mxu0 %v439
        %518 = vmatprep.subr.bf16.mxu0 0
        %519 = vmatpush2.bf16.msra.mxu0 %v438
        %520 = vmatprep.subr.bf16.mxu0 0
        %521 = vmatpush2.bf16.msra.mxu0 %v437
        %522 = vmatprep.subr.bf16.mxu0 0
        %523 = vmatpush2.bf16.msra.mxu0 %v436
        %524 = vmatprep.mubr.bf16.mxu0 %v293
        %525 = vmatmul.mubr.bf16.gmra.mxu0 %v292
        %v526 = vpop.f32.mrf.mxu0
        %v527 = vadd.f32 %v278, %v526
        %v528 = vpop.f32.mrf.mxu0
        %v529 = vpop.f32.mrf.mxu0
        %v530 = vadd.f32 %v278, %v529
        %v531 = vpop.f32.mrf.mxu0
        %532 = vdwg.mxu0
        %533 = vmatprep.subr.bf16.mxu0 0
        %534 = vmatpush1.bf16.msra.mxu0 %v451
        %535 = vmatprep.subr.bf16.mxu0 0
        %536 = vmatpush1.bf16.msra.mxu0 %v450
        %537 = vmatprep.subr.bf16.mxu0 0
        %538 = vmatpush1.bf16.msra.mxu0 %v449
        %539 = vmatprep.subr.bf16.mxu0 0
        %540 = vmatpush1.bf16.msra.mxu0 %v448
        %541 = vmatprep.subr.bf16.mxu0 0
        %542 = vmatpush1.bf16.msra.mxu0 %v447
        %543 = vmatprep.subr.bf16.mxu0 0
        %544 = vmatpush1.bf16.msra.mxu0 %v446
        %545 = vmatprep.subr.bf16.mxu0 0
        %546 = vmatpush1.bf16.msra.mxu0 %v445
        %547 = vmatprep.subr.bf16.mxu0 0
        %548 = vmatpush1.bf16.msra.mxu0 %v444
        %549 = vmatprep.subr.bf16.mxu0 0
        %550 = vmatpush2.bf16.msra.mxu0 %v459
        %551 = vmatprep.subr.bf16.mxu0 0
        %552 = vmatpush2.bf16.msra.mxu0 %v458
        %553 = vmatprep.subr.bf16.mxu0 0
        %554 = vmatpush2.bf16.msra.mxu0 %v457
        %555 = vmatprep.subr.bf16.mxu0 0
        %556 = vmatpush2.bf16.msra.mxu0 %v456
        %557 = vmatprep.subr.bf16.mxu0 0
        %558 = vmatpush2.bf16.msra.mxu0 %v455
        %559 = vmatprep.subr.bf16.mxu0 0
        %560 = vmatpush2.bf16.msra.mxu0 %v454
        %561 = vmatprep.subr.bf16.mxu0 0
        %562 = vmatpush2.bf16.msra.mxu0 %v453
        %563 = vmatprep.subr.bf16.mxu0 0
        %564 = vmatpush2.bf16.msra.mxu0 %v452
        %565 = vmatprep.mubr.bf16.mxu0 %v295
        %566 = vmatmul.mubr.bf16.gmra.mxu0 %v294
        %v567 = vpop.f32.mrf.mxu0
        %v568 = vadd.f32 %v527, %v567
        %v569 = vpop.f32.mrf.mxu0
        %v570 = vpop.f32.mrf.mxu0
        %v571 = vadd.f32 %v530, %v570
        %v572 = vpop.f32.mrf.mxu0
        %573 = vdwg.mxu0
        %574 = vst [vmem:[%s203] sm:$0xff] %v568
        %575 = vst [vmem:[%s203 + $0x8] sm:$0xff] %v571
        %s576 = sand.u32 %s97, 1
        %s577 = scalar_lea.sflag [#allocation4], %s576
        %s578 = sand.u32 %s97, 1
        %s579 = smul.addr %s578, 16
        %s580 = scalar_lea.vmem [#allocation7], %s579
        // Predicated region
        $region41: #{tpu_custom_call.1} parent=31 // pred_check
          %p581 = pneg %p107
        $region42: #{tpu_custom_call.1} parent=31 // pred_check_branch
          %583 = sbr.rel (%p581) target = $region44
        $region43: #{tpu_custom_call.1} parent=31 // pred_region
          %s585 = ssub.s32 256, 256
          %586 = vsyncadd %s577, %s585
          %s587 = smul.addr %s21, 2
          %s588 = smul.addr %s587, 128
          %s589 = scalar_lea.hbm %s3, %s588
          %s590 = sshll.u32 %s580, 4
          %s591 = int_to_ptr.vmem [resolvable:$true] %s590
          %596 = dma.vmem_to_hbm [thread:$0]  %s591, 256, %s589, %s577, 128, 128, 8
        $region44: #{tpu_custom_call.1} parent=31 // pred_fallthru
          _
      $region32: #{tpu_custom_call.1} parent=5 // pred_fallthru
        _
      %p597 = scmp.le.s32.totalorder 2, %s16
      // Predicated region
      $region45: #{tpu_custom_call.1} parent=5 // pred_check
        %p598 = pneg %p597
      $region46: #{tpu_custom_call.1} parent=5 // pred_check_branch
        %600 = sbr.rel (%p598) target = $region48
      $region47: #{tpu_custom_call.1} parent=5 // pred_region
        %s601 = ssub.s32 %s16, 2
        // Predicated region
        $region49: #{tpu_custom_call.1} parent=47 // pred_check
          %p602 = pneg %p113
        $region50: #{tpu_custom_call.1} parent=47 // pred_check_branch
          %604 = sbr.rel (%p602) target = $region52
        $region51: #{tpu_custom_call.1} parent=47 // pred_region
          %s605 = sand.u32 %s98, 1
          %s606 = scalar_lea.sflag [#allocation4], %s605
          %s607 = sand.u32 %s98, 1
          %s608 = smul.addr %s607, 16
          %s609 = scalar_lea.vmem [#allocation7], %s608
          %610 = dma.done %s606, 256
        $region52: #{tpu_custom_call.1} parent=47 // pred_fallthru
          _
      $region48: #{tpu_custom_call.1} parent=5 // pred_fallthru
        _
    $region6: #{tpu_custom_call.1} parent=1 // loop_footer
      %s20 = sadd.s32 1, %s16
    $region7: #{tpu_custom_call.1} parent=1 // loop_footer_branch
      %15 = sbr.rel target = $region3
    $region8: #{tpu_custom_call.1} parent=1 // loop_exit
      _
    %611 = vsyncpa [#allocation3], 1
    %s612 = scalar_lea.sflag [#allocation3], 1
    %613 = vsyncpa %s612, 1
    %614 = vsyncpa [#allocation6], 1
    %615 = vsyncpa [#allocation4], 1
    %s616 = scalar_lea.sflag [#allocation4], 1
    %617 = vsyncpa %s616, 1

</llo_original>
